<compile_context>
chip_gen: v6e
topology: v6e:2x2x1
jax: 0.10.0
libtpu: 0.0.40
codegen_flags: <defaults>
</compile_context>

<pallas_src>
from functools import partial
from typing import List

import numpy as np
import jax
import jax.numpy as jnp
from jax.experimental import pallas as pl
from jax.experimental.pallas import tpu as pltpu


LANE = 128


def check_if_involution(indices: List[int]) -> bool:
    return all(indices[indices[idx]] == idx for idx in range(len(indices)))


def _round_up(a: int, b: int) -> int:
    return -(-a // b) * b


# ------------------------- kernels -------------------------

def _ie_bias_pair_kernel(reps_ref, parts_ref, xa_ref, xb_ref, o_hbm, avg_ref, sem,
                         *, ts: int):
    # reps_ref / parts_ref : scalar-prefetched pair tables in SMEM
    # xa_ref  : (1, TS, 128) block -> x[reps[g]]   (f-th lane tile)
    # xb_ref  : (1, TS, 128) block -> x[parts[g]]  (f-th lane tile)
    # o_hbm   : full (C, S_pad, 128) output, HBM-resident (pl.ANY)
    # avg_ref : (1, TS, 128) VMEM scratch holding the averaged tile
    g = pl.program_id(0)
    f = pl.program_id(1)
    i = reps_ref[g]
    p = parts_ref[g]
    f0 = f * ts

    avg_ref[...] = (xa_ref[...] + xb_ref[...]) * 0.5

    # Write the representative row.
    cp_i = pltpu.make_async_copy(
        avg_ref, o_hbm.at[pl.ds(i, 1), pl.ds(f0, ts), :], sem.at[0])
    cp_i.start()

    # Write the partner row only for true pairs (fixed points: single write).
    @pl.when(p != i)
    def _():
        cp_p = pltpu.make_async_copy(
            avg_ref, o_hbm.at[pl.ds(p, 1), pl.ds(f0, ts), :], sem.at[1])
        cp_p.start()
        cp_p.wait()

    cp_i.wait()


def _ie_bias_small_kernel(x_ref, o_ref, *, perm):
    # Whole (C, S_pad, 128) tensor is VMEM resident; `perm` is a static Python
    # tuple, so process each involution pair exactly once (fixed points copy).
    for i, p in enumerate(perm):
        if i < p:
            avg = (x_ref[i] + x_ref[p]) * 0.5
            o_ref[i] = avg
            o_ref[p] = avg
        elif i == p:
            o_ref[i] = x_ref[i]
        # i > p: already handled when the pair was first visited


# ------------------------- wrapper -------------------------

def ie_bias(x: jax.Array, involution_indices: List[int]) -> jax.Array:
    """Pallas implementation of IEBias.forward: (x + x[perm]) / 2 along axis 0."""
    if not check_if_involution(involution_indices):
        raise ValueError("`involution_indices` must be an involution")

    orig_shape = x.shape
    C = orig_shape[0]
    if C != len(involution_indices):
        raise ValueError("first axis must match the permutation length")
    F = int(np.prod(orig_shape[1:])) if x.ndim > 1 else 1

    dtype = x.dtype
    itemsize = jnp.dtype(dtype).itemsize
    sublanes = max(8, 32 // itemsize)      # 8 for f32, 16 for bf16, 32 for int8/fp8

    # Lane-dense layout: (C, S_pad, 128). Pad F only to the next 128 multiple;
    # extra padding only if multiple lane tiles per row are needed.
    s0 = -(-F // LANE)                     # 128-lane rows per logical row
    target_tile_bytes = 2 << 20            # ~2 MiB per operand tile (review: 2-4 MiB)
    max_ts = max(sublanes,
                 (target_tile_bytes // (LANE * itemsize)) // sublanes * sublanes)
    if s0 <= max_ts:
        TS = s0                            # full-extent second-minor block: always legal
        S_pad = s0
    else:
        n_tiles = -(-s0 // max_ts)
        TS = _round_up(-(-s0 // n_tiles), sublanes)
        S_pad = TS * n_tiles
    F_pad = S_pad * LANE

    x2 = x.reshape(C, F)
    if F_pad != F:
        # TODO(synk): handle the ragged lane tail inside the kernel (masked
        # pltpu.store / partial last tile) to avoid this pad+slice HBM round trip.
        x2 = jnp.pad(x2, ((0, 0), (0, F_pad - F)))
    x3 = x2.reshape(C, S_pad, LANE)

    total_bytes = C * F_pad * itemsize
    small_problem = (C <= 128) and (total_bytes <= (4 << 20))

    if small_problem:
        # Whole tensor in VMEM, one grid step, pair-once static unroll.
        # Explicit vmem_limit keeps the double-buffered full-tensor blocks safe
        # on v5e's 16 MiB default scoped VMEM (32 MiB fits every generation).
        out3 = pl.pallas_call(
            partial(_ie_bias_small_kernel,
                    perm=tuple(int(i) for i in involution_indices)),
            out_shape=jax.ShapeDtypeStruct((C, S_pad, LANE), dtype),
            grid=(1,),
            in_specs=[pl.BlockSpec((C, S_pad, LANE), lambda i: (0, 0, 0))],
            out_specs=pl.BlockSpec((C, S_pad, LANE), lambda i: (0, 0, 0)),
            compiler_params=pltpu.CompilerParams(
                vmem_limit_bytes=32 * 1024 * 1024),
        )(x3)
    else:
        perm = [int(i) for i in involution_indices]
        reps_list = [i for i in range(C) if i <= perm[i]]   # pair representatives
        parts_list = [perm[i] for i in reps_list]
        reps = jnp.asarray(reps_list, dtype=jnp.int32)
        parts = jnp.asarray(parts_list, dtype=jnp.int32)
        n_reps = len(reps_list)
        n_f = S_pad // TS

        grid_spec = pltpu.PrefetchScalarGridSpec(
            num_scalar_prefetch=2,
            grid=(n_reps, n_f),
            in_specs=[
                # representative row reps[g], f-th lane tile
                pl.BlockSpec((1, TS, LANE), lambda g, f, reps, parts: (reps[g], f, 0)),
                # partner row parts[g], f-th lane tile
                pl.BlockSpec((1, TS, LANE), lambda g, f, reps, parts: (parts[g], f, 0)),
            ],
            # Output stays in HBM; both rows of the pair are written via manual DMA.
            out_specs=pl.BlockSpec(memory_space=pl.ANY),
            scratch_shapes=[
                pltpu.VMEM((1, TS, LANE), dtype),      # averaged tile
                pltpu.SemaphoreType.DMA((2,)),         # two output DMAs per step
            ],
        )

        # TODO(synk): multi-row manual-gather blocking for small-F / large-C shapes
        # (gather R pair rows per step into VMEM scratch) to amortize step overhead.
        # TODO(synk): if callers can donate x, input_output_aliases would let
        # fixed-point rows skip the writeback entirely.
        out3 = pl.pallas_call(
            partial(_ie_bias_pair_kernel, ts=TS),
            out_shape=jax.ShapeDtypeStruct((C, S_pad, LANE), dtype),
            grid_spec=grid_spec,
            compiler_params=pltpu.CompilerParams(
                dimension_semantics=("parallel", "parallel"),
                vmem_limit_bytes=32 * 1024 * 1024,     # v7x-safe; ~10 MiB actually live
            ),
            cost_estimate=pl.CostEstimate(
                flops=2 * C * F_pad,
                transcendentals=0,
                bytes_accessed=2 * C * F_pad * itemsize,   # pair-once: read + write
            ),
        )(reps, parts, x3, x3)

    out2 = out3.reshape(C, F_pad)
    if F_pad != F:
        out2 = out2[:, :F]              # drop lane padding before restoring shape
    return out2.reshape(orig_shape)


# ------------------------- demo / self-test -------------------------

if __name__ == "__main__":
    key = jax.random.PRNGKey(0)
    k1, k2, k3 = jax.random.split(key, 3)

    # --- Test 1: small-problem path (whole tensor resident in VMEM) ---
    involution_small = [1, 0, 3, 2, 5, 4, 7, 6]       # swap adjacent pairs
    assert check_if_involution(involution_small)
    x_small = jax.random.normal(k1, (8, 4, 16), dtype=jnp.float32)

    y_small = jax.block_until_ready(ie_bias(x_small, involution_small))
    perm_s = jnp.asarray(involution_small, dtype=jnp.int32)
    ref_small = (x_small + x_small[perm_s]) / 2
    np.testing.assert_allclose(np.asarray(y_small), np.asarray(ref_small),
                               rtol=1e-6, atol=1e-6)

    # --- Test 2: tiled pair-once path, ragged F (not a lane multiple) ---
    C_big = 200
    involution_big = list(range(C_big))
    for i in range(0, 100, 2):                        # pairs in the first half,
        involution_big[i], involution_big[i + 1] = i + 1, i
    assert check_if_involution(involution_big)        # second half are fixed points
    x_big = jax.random.normal(k2, (C_big, 516), dtype=jnp.float32)

    y_big = jax.block_until_ready(ie_bias(x_big, involution_big))
    perm_b = jnp.asarray(involution_big, dtype=jnp.int32)
    ref_big = (x_big + x_big[perm_b]) / 2
    np.testing.assert_allclose(np.asarray(y_big), np.asarray(ref_big),
                               rtol=1e-6, atol=1e-6)

    # --- Test 3: tiled pair-once path, lane-aligned F (no pad/slice) ---
    C_rev = 160
    involution_rev = [C_rev - 1 - i for i in range(C_rev)]   # reverse = involution
    assert check_if_involution(involution_rev)
    x_rev = jax.random.normal(k3, (C_rev, 256), dtype=jnp.float32)

    y_rev = jax.block_until_ready(ie_bias(x_rev, involution_rev))
    perm_r = jnp.asarray(involution_rev, dtype=jnp.int32)
    ref_rev = (x_rev + x_rev[perm_r]) / 2
    np.testing.assert_allclose(np.asarray(y_rev), np.asarray(ref_rev),
                               rtol=1e-6, atol=1e-6)

    print("KERNEL_OK")
</pallas_src>

<mosaic_0001>
module attributes {stable_mosaic.version = 11 : i64} {
  func.func @_ie_bias_small_kernel(%arg0: i32, %arg1: memref<8x1x128xf32, #tpu.memory_space<vmem>>, %arg2: memref<8x1x128xf32, #tpu.memory_space<vmem>>) attributes {dimension_semantics = [#tpu.dimension_semantics<arbitrary>], iteration_bounds = array<i64: 1>, scalar_prefetch = 0 : i64, scratch_operands = 0 : i64, tpu.core_type = #tpu.core_type<tc>, window_params = [{pipeline_mode = #tpu.pipeline_mode<synchronous>, transform_indices = @transform_0, window_bounds = array<i64: 8, 1, 128>}, {pipeline_mode = #tpu.pipeline_mode<synchronous>, transform_indices = @transform_1, window_bounds = array<i64: 8, 1, 128>}]} {
    %c0 = arith.constant 0 : index
    %c0_0 = arith.constant 0 : index
    %c0_1 = arith.constant 0 : index
    %0 = vector.load %arg1[%c0, %c0_0, %c0_1] : memref<8x1x128xf32, #tpu.memory_space<vmem>>, vector<1x1x128xf32>
    %1 = vector.shape_cast %0 : vector<1x1x128xf32> to vector<1x128xf32>
    %c1 = arith.constant 1 : index
    %c0_2 = arith.constant 0 : index
    %c0_3 = arith.constant 0 : index
    %2 = vector.load %arg1[%c1, %c0_2, %c0_3] : memref<8x1x128xf32, #tpu.memory_space<vmem>>, vector<1x1x128xf32>
    %3 = vector.shape_cast %2 : vector<1x1x128xf32> to vector<1x128xf32>
    %4 = arith.addf %1, %3 : vector<1x128xf32>
    %cst = arith.constant 5.000000e-01 : f32
    %5 = vector.broadcast %cst : f32 to vector<1x128xf32>
    %6 = arith.mulf %4, %5 : vector<1x128xf32>
    %c0_4 = arith.constant 0 : index
    %c0_5 = arith.constant 0 : index
    %c0_6 = arith.constant 0 : index
    %7 = vector.load %arg2[%c0_4, %c0_5, %c0_6] : memref<8x1x128xf32, #tpu.memory_space<vmem>>, vector<1x1x128xf32>
    %8 = vector.shape_cast %7 : vector<1x1x128xf32> to vector<1x128xf32>
    %9 = vector.shape_cast %6 : vector<1x128xf32> to vector<1x1x128xf32>
    tpu.vector_store %arg2[%c0_4, %c0_5, %c0_6], %9 {strides = array<i32>} : memref<8x1x128xf32, #tpu.memory_space<vmem>>, vector<1x1x128xf32>,
    %c1_7 = arith.constant 1 : index
    %c0_8 = arith.constant 0 : index
    %c0_9 = arith.constant 0 : index
    %10 = vector.load %arg2[%c1_7, %c0_8, %c0_9] : memref<8x1x128xf32, #tpu.memory_space<vmem>>, vector<1x1x128xf32>
    %11 = vector.shape_cast %10 : vector<1x1x128xf32> to vector<1x128xf32>
    %12 = vector.shape_cast %6 : vector<1x128xf32> to vector<1x1x128xf32>
    tpu.vector_store %arg2[%c1_7, %c0_8, %c0_9], %12 {strides = array<i32>} : memref<8x1x128xf32, #tpu.memory_space<vmem>>, vector<1x1x128xf32>,
    %c2 = arith.constant 2 : index
    %c0_10 = arith.constant 0 : index
    %c0_11 = arith.constant 0 : index
    %13 = vector.load %arg1[%c2, %c0_10, %c0_11] : memref<8x1x128xf32, #tpu.memory_space<vmem>>, vector<1x1x128xf32>
    %14 = vector.shape_cast %13 : vector<1x1x128xf32> to vector<1x128xf32>
    %c3 = arith.constant 3 : index
    %c0_12 = arith.constant 0 : index
    %c0_13 = arith.constant 0 : index
    %15 = vector.load %arg1[%c3, %c0_12, %c0_13] : memref<8x1x128xf32, #tpu.memory_space<vmem>>, vector<1x1x128xf32>
    %16 = vector.shape_cast %15 : vector<1x1x128xf32> to vector<1x128xf32>
    %17 = arith.addf %14, %16 : vector<1x128xf32>
    %cst_14 = arith.constant 5.000000e-01 : f32
    %18 = vector.broadcast %cst_14 : f32 to vector<1x128xf32>
    %19 = arith.mulf %17, %18 : vector<1x128xf32>
    %c2_15 = arith.constant 2 : index
    %c0_16 = arith.constant 0 : index
    %c0_17 = arith.constant 0 : index
    %20 = vector.load %arg2[%c2_15, %c0_16, %c0_17] : memref<8x1x128xf32, #tpu.memory_space<vmem>>, vector<1x1x128xf32>
    %21 = vector.shape_cast %20 : vector<1x1x128xf32> to vector<1x128xf32>
    %22 = vector.shape_cast %19 : vector<1x128xf32> to vector<1x1x128xf32>
    tpu.vector_store %arg2[%c2_15, %c0_16, %c0_17], %22 {strides = array<i32>} : memref<8x1x128xf32, #tpu.memory_space<vmem>>, vector<1x1x128xf32>,
    %c3_18 = arith.constant 3 : index
    %c0_19 = arith.constant 0 : index
    %c0_20 = arith.constant 0 : index
    %23 = vector.load %arg2[%c3_18, %c0_19, %c0_20] : memref<8x1x128xf32, #tpu.memory_space<vmem>>, vector<1x1x128xf32>
    %24 = vector.shape_cast %23 : vector<1x1x128xf32> to vector<1x128xf32>
    %25 = vector.shape_cast %19 : vector<1x128xf32> to vector<1x1x128xf32>
    tpu.vector_store %arg2[%c3_18, %c0_19, %c0_20], %25 {strides = array<i32>} : memref<8x1x128xf32, #tpu.memory_space<vmem>>, vector<1x1x128xf32>,
    %c4 = arith.constant 4 : index
    %c0_21 = arith.constant 0 : index
    %c0_22 = arith.constant 0 : index
    %26 = vector.load %arg1[%c4, %c0_21, %c0_22] : memref<8x1x128xf32, #tpu.memory_space<vmem>>, vector<1x1x128xf32>
    %27 = vector.shape_cast %26 : vector<1x1x128xf32> to vector<1x128xf32>
    %c5 = arith.constant 5 : index
    %c0_23 = arith.constant 0 : index
    %c0_24 = arith.constant 0 : index
    %28 = vector.load %arg1[%c5, %c0_23, %c0_24] : memref<8x1x128xf32, #tpu.memory_space<vmem>>, vector<1x1x128xf32>
    %29 = vector.shape_cast %28 : vector<1x1x128xf32> to vector<1x128xf32>
    %30 = arith.addf %27, %29 : vector<1x128xf32>
    %cst_25 = arith.constant 5.000000e-01 : f32
    %31 = vector.broadcast %cst_25 : f32 to vector<1x128xf32>
    %32 = arith.mulf %30, %31 : vector<1x128xf32>
    %c4_26 = arith.constant 4 : index
    %c0_27 = arith.constant 0 : index
    %c0_28 = arith.constant 0 : index
    %33 = vector.load %arg2[%c4_26, %c0_27, %c0_28] : memref<8x1x128xf32, #tpu.memory_space<vmem>>, vector<1x1x128xf32>
    %34 = vector.shape_cast %33 : vector<1x1x128xf32> to vector<1x128xf32>
    %35 = vector.shape_cast %32 : vector<1x128xf32> to vector<1x1x128xf32>
    tpu.vector_store %arg2[%c4_26, %c0_27, %c0_28], %35 {strides = array<i32>} : memref<8x1x128xf32, #tpu.memory_space<vmem>>, vector<1x1x128xf32>,
    %c5_29 = arith.constant 5 : index
    %c0_30 = arith.constant 0 : index
    %c0_31 = arith.constant 0 : index
    %36 = vector.load %arg2[%c5_29, %c0_30, %c0_31] : memref<8x1x128xf32, #tpu.memory_space<vmem>>, vector<1x1x128xf32>
    %37 = vector.shape_cast %36 : vector<1x1x128xf32> to vector<1x128xf32>
    %38 = vector.shape_cast %32 : vector<1x128xf32> to vector<1x1x128xf32>
    tpu.vector_store %arg2[%c5_29, %c0_30, %c0_31], %38 {strides = array<i32>} : memref<8x1x128xf32, #tpu.memory_space<vmem>>, vector<1x1x128xf32>,
    %c6 = arith.constant 6 : index
    %c0_32 = arith.constant 0 : index
    %c0_33 = arith.constant 0 : index
    %39 = vector.load %arg1[%c6, %c0_32, %c0_33] : memref<8x1x128xf32, #tpu.memory_space<vmem>>, vector<1x1x128xf32>
    %40 = vector.shape_cast %39 : vector<1x1x128xf32> to vector<1x128xf32>
    %c7 = arith.constant 7 : index
    %c0_34 = arith.constant 0 : index
    %c0_35 = arith.constant 0 : index
    %41 = vector.load %arg1[%c7, %c0_34, %c0_35] : memref<8x1x128xf32, #tpu.memory_space<vmem>>, vector<1x1x128xf32>
    %42 = vector.shape_cast %41 : vector<1x1x128xf32> to vector<1x128xf32>
    %43 = arith.addf %40, %42 : vector<1x128xf32>
    %cst_36 = arith.constant 5.000000e-01 : f32
    %44 = vector.broadcast %cst_36 : f32 to vector<1x128xf32>
    %45 = arith.mulf %43, %44 : vector<1x128xf32>
    %c6_37 = arith.constant 6 : index
    %c0_38 = arith.constant 0 : index
    %c0_39 = arith.constant 0 : index
    %46 = vector.load %arg2[%c6_37, %c0_38, %c0_39] : memref<8x1x128xf32, #tpu.memory_space<vmem>>, vector<1x1x128xf32>
    %47 = vector.shape_cast %46 : vector<1x1x128xf32> to vector<1x128xf32>
    %48 = vector.shape_cast %45 : vector<1x128xf32> to vector<1x1x128xf32>
    tpu.vector_store %arg2[%c6_37, %c0_38, %c0_39], %48 {strides = array<i32>} : memref<8x1x128xf32, #tpu.memory_space<vmem>>, vector<1x1x128xf32>,
    %c7_40 = arith.constant 7 : index
    %c0_41 = arith.constant 0 : index
    %c0_42 = arith.constant 0 : index
    %49 = vector.load %arg2[%c7_40, %c0_41, %c0_42] : memref<8x1x128xf32, #tpu.memory_space<vmem>>, vector<1x1x128xf32>
    %50 = vector.shape_cast %49 : vector<1x1x128xf32> to vector<1x128xf32>
    %51 = vector.shape_cast %45 : vector<1x128xf32> to vector<1x1x128xf32>
    tpu.vector_store %arg2[%c7_40, %c0_41, %c0_42], %51 {strides = array<i32>} : memref<8x1x128xf32, #tpu.memory_space<vmem>>, vector<1x1x128xf32>,
    return
  }
  func.func @transform_0(%arg0: i32) -> (i32, i32, i32) {
    %c0_i32 = arith.constant 0 : i32
    %c0_i32_0 = arith.constant 0 : i32
    %c0_i32_1 = arith.constant 0 : i32
    %c0_i32_2 = arith.constant 0 : i32
    return %c0_i32, %c0_i32_0, %c0_i32_1 : i32, i32, i32
  }
  func.func @transform_1(%arg0: i32) -> (i32, i32, i32) {
    %c0_i32 = arith.constant 0 : i32
    %c0_i32_0 = arith.constant 0 : i32
    %c0_i32_1 = arith.constant 0 : i32
    %c0_i32_2 = arith.constant 0 : i32
    return %c0_i32, %c0_i32_0, %c0_i32_1 : i32, i32, i32
  }
}

</mosaic_0001>

<llo_original>
// kernel: tpu_custom_call.1
$region0: #{tpu_custom_call.1}
  #allocation0 [shape = 'u32[]', space=smem, size = 0x4, offset = 0x4, fixed_abs, tag = 'smem constant byte address 0x4 - core index']
  #allocation1 [shape = 'u32[144,128]{1,0:T(1,128)}', space=vmem, size = 0x12000, scoped, tag = 'internal scratch']
  %s0 = inlined_call_operand.hbm [shape: f32[8,1,128], index: 0, kind: input, shape index: {}]
  %s1 = inlined_call_operand.hbm [shape: f32[8,1,128], index: 1, kind: output, shape index: {}]
  %s2 = sld [smem:[#allocation0]]
  $region18: #{tpu_custom_call.1} parent=0
    _
  %s4 = ssub.s32 1, %s2
  %s5 = scalar_select 0, %s4, %s2
  $region1: #{tpu_custom_call.1} parent=0
    #allocation2 [shape = 'u8[4096]{0}', space=vmem, size = 0x1000, scoped, tag = 'input window, operand 0, single buffered']
    #allocation3 [shape = 's32[1]{0}', space=sflag, size = 0x4, scoped, tag = 'scoped memory for tpu_custom_call.1']
    #allocation4 [shape = 's32[1]{0}', space=sflag, size = 0x4, scoped, tag = 'scoped memory for tpu_custom_call.1']
    #allocation5 [shape = 'u8[4096]{0}', space=vmem, size = 0x1000, scoped, tag = 'output window, operand 0, single buffered']
    %6 = vsyncpa [#allocation3], 0
    %7 = vsyncpa [#allocation4], 0
    // Predicated region
    $region2: #{tpu_custom_call.1} parent=1 // pred_check
      _
    $region3: #{tpu_custom_call.1} parent=1 // pred_check_branch
      %9 = sbr.rel (0) target = $region5
    $region4: #{tpu_custom_call.1} parent=1 // pred_region
      %s11 = ssub.s32 128, 128
      %12 = vsyncadd [#allocation3], %s11
      %s13 = sshll.u32 [#allocation2], 4
      %s14 = int_to_ptr.vmem [resolvable:$true] %s13
      %19 = dma.hbm_to_vmem [thread:$0]  %s0, 128, %s14, [#allocation3], 16, 16, 1
    $region5: #{tpu_custom_call.1} parent=1 // pred_fallthru
      _
    // Predicated region
    $region6: #{tpu_custom_call.1} parent=1 // pred_check
      _
    $region7: #{tpu_custom_call.1} parent=1 // pred_check_branch
      %21 = sbr.rel (0) target = $region9
    $region8: #{tpu_custom_call.1} parent=1 // pred_region
      %22 = dma.done [#allocation3], 128
    $region9: #{tpu_custom_call.1} parent=1 // pred_fallthru
      _
    %v23 = vld [vmem:[#allocation2] sm:$0x1]
    %s24 = scalar_lea.vmem [#allocation2], 1
    %v25 = vld [vmem:[%s24] sm:$0x1]
    %v26 = vadd.f32 %v23, %v25
    %v27 = vmul.f32 %v26, 0.5
    %28 = vst [vmem:[#allocation5] sm:$0x1] %v27
    %s29 = scalar_lea.vmem [#allocation5], 1
    %30 = vst [vmem:[%s29] sm:$0x1] %v27
    %s31 = scalar_lea.vmem [#allocation2], 2
    %v32 = vld [vmem:[%s31] sm:$0x1]
    %s33 = scalar_lea.vmem [#allocation2], 3
    %v34 = vld [vmem:[%s33] sm:$0x1]
    %v35 = vadd.f32 %v32, %v34
    %v36 = vmul.f32 %v35, 0.5
    %s37 = scalar_lea.vmem [#allocation5], 2
    %38 = vst [vmem:[%s37] sm:$0x1] %v36
    %s39 = scalar_lea.vmem [#allocation5], 3
    %40 = vst [vmem:[%s39] sm:$0x1] %v36
    %s41 = scalar_lea.vmem [#allocation2], 4
    %v42 = vld [vmem:[%s41] sm:$0x1]
    %s43 = scalar_lea.vmem [#allocation2], 5
    %v44 = vld [vmem:[%s43] sm:$0x1]
    %v45 = vadd.f32 %v42, %v44
    %v46 = vmul.f32 %v45, 0.5
    %s47 = scalar_lea.vmem [#allocation5], 4
    %48 = vst [vmem:[%s47] sm:$0x1] %v46
    %s49 = scalar_lea.vmem [#allocation5], 5
    %50 = vst [vmem:[%s49] sm:$0x1] %v46
    %s51 = scalar_lea.vmem [#allocation2], 6
    %v52 = vld [vmem:[%s51] sm:$0x1]
    %s53 = scalar_lea.vmem [#allocation2], 7
    %v54 = vld [vmem:[%s53] sm:$0x1]
    %v55 = vadd.f32 %v52, %v54
    %v56 = vmul.f32 %v55, 0.5
    %s57 = scalar_lea.vmem [#allocation5], 6
    %58 = vst [vmem:[%s57] sm:$0x1] %v56
    %s59 = scalar_lea.vmem [#allocation5], 7
    %60 = vst [vmem:[%s59] sm:$0x1] %v56
    // Predicated region
    $region10: #{tpu_custom_call.1} parent=1 // pred_check
      _
    $region11: #{tpu_custom_call.1} parent=1 // pred_check_branch
      %62 = sbr.rel (0) target = $region13
    $region12: #{tpu_custom_call.1} parent=1 // pred_region
      %s64 = ssub.s32 128, 128
      %65 = vsyncadd [#allocation4], %s64
      %s66 = sshll.u32 [#allocation5], 4
      %s67 = int_to_ptr.vmem [resolvable:$true] %s66
      %72 = dma.vmem_to_hbm [thread:$0]  %s67, 128, %s1, [#allocation4], 16, 16, 1
    $region13: #{tpu_custom_call.1} parent=1 // pred_fallthru
      _
    // Predicated region
    $region14: #{tpu_custom_call.1} parent=1 // pred_check
      _
    $region15: #{tpu_custom_call.1} parent=1 // pred_check_branch
      %74 = sbr.rel (0) target = $region17
    $region16: #{tpu_custom_call.1} parent=1 // pred_region
      %75 = dma.done [#allocation4], 128
    $region17: #{tpu_custom_call.1} parent=1 // pred_fallthru
      _
    %76 = vsyncpa [#allocation3], 1
    %77 = vsyncpa [#allocation4], 1

</llo_original>
